<compile_context>
chip_gen: v5e
topology: v5e:2x2
jax: 0.10.0
libtpu: 0.0.40
codegen_flags: <defaults>
</compile_context>

<pallas_src>
import functools

import jax
import jax.numpy as jnp
from jax import lax
from jax.experimental import pallas as pl
from jax.experimental.pallas import tpu as pltpu


_ROW_PAD_LABEL = jnp.iinfo(jnp.int32).min       # sentinel for padded anchor rows
_COL_PAD_LABEL = jnp.iinfo(jnp.int32).min + 1   # sentinel for padded candidate cols
# (assumes real labels never use these extreme int32 values)


def _round_up(v, m):
    return ((v + m - 1) // m) * m


def _bed_loss_small_kernel(x_ref, xt_ref, sq_col_ref, sq_row_ref,
                           t_col_ref, t_row_ref, o_ref, *, alpha):
    """Single-block path: whole (n, n) squared-distance matrix in one shot."""
    gram = lax.dot_general(x_ref[...], xt_ref[...],
                           (((1,), (0,)), ((), ())),
                           preferred_element_type=jnp.float32)      # (n, n)
    d2 = sq_col_ref[...] + sq_row_ref[...] - 2.0 * gram             # (n, n)
    mask = t_col_ref[...] == t_row_ref[...]                         # (n, n)

    # Hard mining on SQUARED distances (sqrt/clamp deferred to the (n,1) vecs).
    ap2 = jnp.max(jnp.where(mask, d2, 0.0), axis=1, keepdims=True)
    an2 = jnp.min(jnp.where(mask, jnp.inf, d2), axis=1, keepdims=True)
    dist_ap = jnp.sqrt(jnp.maximum(ap2, 1e-12))
    dist_an = jnp.sqrt(jnp.maximum(an2, 1e-12))

    pos_loss = jnp.mean(jnp.exp(-alpha * dist_ap))                  # exp -> EUP
    neg_loss = jnp.mean(jnp.exp(-alpha * dist_an))
    o_ref[0, 0] = 1.0 - pos_loss + neg_loss                         # SMEM scalar


def _bed_loss_tiled_kernel(x_rows_ref, sq_col_ref, t_col_ref,
                           xt_cols_ref, sq_row_ref, t_row_ref,
                           ap_ref, an_ref):
    """2-D tiled path: online hardest-positive / hardest-negative on dist^2.

    Grid = (row_tiles [parallel], col_tiles [arbitrary]).  The (row_tile, 1)
    output blocks are the accumulators (resident across the column axis).
    """
    j = pl.program_id(1)

    @pl.when(j == 0)
    def _():
        ap_ref[...] = jnp.zeros_like(ap_ref)          # d2 >= 0-ish; diag is a positive
        an_ref[...] = jnp.full_like(an_ref, jnp.inf)

    gram = lax.dot_general(x_rows_ref[...], xt_cols_ref[...],
                           (((1,), (0,)), ((), ())),
                           preferred_element_type=jnp.float32)      # (tr, tc)
    d2 = sq_col_ref[...] + sq_row_ref[...] - 2.0 * gram             # (tr, tc)
    mask = t_col_ref[...] == t_row_ref[...]                         # (tr, tc)

    ap_ref[...] = jnp.maximum(
        ap_ref[...],
        jnp.max(jnp.where(mask, d2, 0.0), axis=1, keepdims=True))
    an_ref[...] = jnp.minimum(
        an_ref[...],
        jnp.min(jnp.where(mask, jnp.inf, d2), axis=1, keepdims=True))

    @pl.when(j == pl.num_programs(1) - 1)
    def _():
        # Deferred clamp + sqrt (exactly equivalent to per-element clamp+sqrt,
        # since max/min commute with max(., 1e-12) and sqrt is monotone).
        ap_ref[...] = jnp.sqrt(jnp.maximum(ap_ref[...], 1e-12))
        an_ref[...] = jnp.sqrt(jnp.maximum(an_ref[...], 1e-12))


def bed_loss(inputs, targets, alpha=0.3, *, row_tile=256, col_tile=512,
             gram_dtype=jnp.float32, small_n_threshold=512):
    """inputs: (n, feat_dim) float, targets: (n,) int labels -> scalar loss.

    gram_dtype=jnp.bfloat16 enables the fast MXU gram on v6e/v7x (norms and
    accumulation stay f32); guard with a tolerance test against bed_loss_ref.
    """
    n, d = inputs.shape
    x = inputs.astype(jnp.float32)

    # Wrapper-side layout plumbing: pad feat_dim to a multiple of 128
    # (numerically neutral for the gram and the row norms).
    d_pad = max(128, _round_up(d, 128))
    if d_pad != d:
        x = jnp.pad(x, ((0, 0), (0, d_pad - d)))

    sq = jnp.sum(x * x, axis=1, keepdims=True)          # (n, 1) f32 (always f32)
    t = targets.astype(jnp.int32)
    xg = x.astype(gram_dtype)                           # gram operands only

    if n <= small_n_threshold:
        # Small n: no grid (no pipeline machinery), whole problem in one tile.
        out = pl.pallas_call(
            functools.partial(_bed_loss_small_kernel, alpha=alpha),
            out_shape=jax.ShapeDtypeStruct((1, 1), jnp.float32),
            in_specs=[pl.BlockSpec(memory_space=pltpu.MemorySpace.VMEM)] * 6,
            out_specs=pl.BlockSpec(memory_space=pltpu.MemorySpace.SMEM),
        )(xg, xg.T, sq, sq.reshape(1, n), t.reshape(n, 1), t.reshape(1, n))
        return out[0, 0]

    # ---- Tiled path: stream column tiles, parallel row tiles. ----
    # Rows and columns are padded independently to the tile sizes.
    n_r = _round_up(n, row_tile)
    n_c = _round_up(n, col_tile)

    x_rows = jnp.pad(xg, ((0, n_r - n), (0, 0)))                       # (n_r, d_pad)
    x_cols_t = jnp.pad(xg, ((0, n_c - n), (0, 0))).T                   # (d_pad, n_c)

    sq_col = jnp.pad(sq, ((0, n_r - n), (0, 0)))                       # (n_r, 1)
    # Padded candidate columns get +inf norms: their dist^2 is +inf, so they
    # can never be the hardest negative; labels are sentinels so they can
    # never be a positive for a real anchor.
    sq_row = jnp.pad(sq[:, 0], (0, n_c - n),
                     constant_values=jnp.inf).reshape(1, n_c)          # (1, n_c)
    t_col = jnp.pad(t, (0, n_r - n),
                    constant_values=_ROW_PAD_LABEL).reshape(n_r, 1)    # (n_r, 1)
    t_row = jnp.pad(t, (0, n_c - n),
                    constant_values=_COL_PAD_LABEL).reshape(1, n_c)    # (1, n_c)

    num_row_tiles = n_r // row_tile
    num_col_tiles = n_c // col_tile

    ap_pad, an_pad = pl.pallas_call(
        _bed_loss_tiled_kernel,
        out_shape=(jax.ShapeDtypeStruct((n_r, 1), jnp.float32),
                   jax.ShapeDtypeStruct((n_r, 1), jnp.float32)),
        grid_spec=pltpu.PrefetchScalarGridSpec(
            num_scalar_prefetch=0,
            grid=(num_row_tiles, num_col_tiles),
            in_specs=[
                pl.BlockSpec((row_tile, d_pad), lambda i, j: (i, 0)),  # anchors
                pl.BlockSpec((row_tile, 1), lambda i, j: (i, 0)),      # ||xi||^2
                pl.BlockSpec((row_tile, 1), lambda i, j: (i, 0)),      # labels (col)
                pl.BlockSpec((d_pad, col_tile), lambda i, j: (0, j)),  # candidates^T
                pl.BlockSpec((1, col_tile), lambda i, j: (0, j)),      # ||xj||^2
                pl.BlockSpec((1, col_tile), lambda i, j: (0, j)),      # labels (row)
            ],
            out_specs=[
                pl.BlockSpec((row_tile, 1), lambda i, j: (i, 0)),      # dist_ap
                pl.BlockSpec((row_tile, 1), lambda i, j: (i, 0)),      # dist_an
            ],
        ),
        compiler_params=pltpu.CompilerParams(
            dimension_semantics=("parallel", "arbitrary")),
    )(x_rows, sq_col, t_col, x_cols_t, sq_row, t_row)

    # Drop padded anchor rows, then exp + mean (O(n) work) in the wrapper.
    dist_ap = ap_pad[:n, 0]
    dist_an = an_pad[:n, 0]
    pos_loss = jnp.mean(jnp.exp(-alpha * dist_ap))
    neg_loss = jnp.mean(jnp.exp(-alpha * dist_an))
    return 1.0 - pos_loss + neg_loss


def bed_loss_ref(inputs, targets, alpha=0.3):
    """Pure-JAX reference mirroring the PyTorch forward."""
    x = inputs.astype(jnp.float32)
    sq = jnp.sum(x ** 2, axis=1, keepdims=True)
    dist = sq + sq.T - 2.0 * (x @ x.T)
    dist = jnp.sqrt(jnp.maximum(dist, 1e-12))
    mask = targets[:, None] == targets[None, :]
    dist_ap = jnp.max(jnp.where(mask, dist, -jnp.inf), axis=1)
    dist_an = jnp.min(jnp.where(mask, jnp.inf, dist), axis=1)
    return (1.0 - jnp.mean(jnp.exp(-alpha * dist_ap))
            + jnp.mean(jnp.exp(-alpha * dist_an)))


if __name__ == "__main__":
    key = jax.random.PRNGKey(0)
    k1, k2, k3 = jax.random.split(key, 3)

    # 1) Small case -> single-block (no-grid) kernel path, f32 gram.
    n, feat_dim = 8, 32
    inputs = jax.random.normal(k1, (n, feat_dim), dtype=jnp.float32)
    targets = jnp.array([0, 0, 1, 1, 2, 2, 3, 3], dtype=jnp.int32)
    loss = jax.block_until_ready(bed_loss(inputs, targets, alpha=0.3))
    ref = bed_loss_ref(inputs, targets, alpha=0.3)
    assert jnp.allclose(loss, ref, rtol=1e-5, atol=1e-5), (loss, ref)

    # 2) Tiled 2-D path (rows parallel, columns streamed), n multiple of tiles.
    n2, d2 = 256, 64
    inputs2 = jax.random.normal(k2, (n2, d2), dtype=jnp.float32)
    targets2 = jnp.arange(n2, dtype=jnp.int32) // 8      # 32 classes x 8 samples
    loss2 = jax.block_until_ready(
        bed_loss(inputs2, targets2, alpha=0.3,
                 row_tile=128, col_tile=128, small_n_threshold=0))
    ref2 = bed_loss_ref(inputs2, targets2, alpha=0.3)
    assert jnp.allclose(loss2, ref2, rtol=1e-4, atol=1e-4), (loss2, ref2)

    # 3) Tiled path with row/column padding (n not a multiple of the tiles).
    n3, d3 = 200, 48
    inputs3 = jax.random.normal(k3, (n3, d3), dtype=jnp.float32)
    targets3 = jnp.arange(n3, dtype=jnp.int32) // 5      # 40 classes x 5 samples
    loss3 = jax.block_until_ready(
        bed_loss(inputs3, targets3, alpha=0.3,
                 row_tile=128, col_tile=128, small_n_threshold=0))
    ref3 = bed_loss_ref(inputs3, targets3, alpha=0.3)
    assert jnp.allclose(loss3, ref3, rtol=1e-4, atol=1e-4), (loss3, ref3)

    # 4) bf16 gram (v6e/v7x fast path), tolerance-guarded against the f32 ref.
    loss4 = jax.block_until_ready(
        bed_loss(inputs2, targets2, alpha=0.3,
                 row_tile=128, col_tile=128, small_n_threshold=0,
                 gram_dtype=jnp.bfloat16))
    assert jnp.allclose(loss4, ref2, rtol=5e-3, atol=5e-3), (loss4, ref2)

    print("KERNEL_OK")
</pallas_src>

<mosaic_0001>
module attributes {stable_mosaic.version = 11 : i64} {
  func.func @_bed_loss_small_kernel(%arg0: memref<8x128xf32, #tpu.memory_space<vmem>>, %arg1: memref<128x8xf32, #tpu.memory_space<vmem>>, %arg2: memref<8x1xf32, #tpu.memory_space<vmem>>, %arg3: memref<1x8xf32, #tpu.memory_space<vmem>>, %arg4: memref<8x1xi32, #tpu.memory_space<vmem>>, %arg5: memref<1x8xi32, #tpu.memory_space<vmem>>, %arg6: memref<1x1xf32, #tpu.memory_space<smem>>) attributes {dimension_semantics = [], scalar_prefetch = 0 : i64, scratch_operands = 0 : i64, tpu.core_type = #tpu.core_type<tc>} {
    %c0 = arith.constant 0 : index
    %c0_0 = arith.constant 0 : index
    %0 = vector.load %arg0[%c0, %c0_0] : memref<8x128xf32, #tpu.memory_space<vmem>>, vector<8x128xf32>
    %c0_1 = arith.constant 0 : index
    %c0_2 = arith.constant 0 : index
    %1 = vector.load %arg1[%c0_1, %c0_2] : memref<128x8xf32, #tpu.memory_space<vmem>>, vector<128x8xf32>
    %cst = arith.constant dense<0.000000e+00> : vector<8x8xf32>
    %2 = tpu.matmul %0, %1, %cst {dimension_numbers = #tpu.dot_dimension_numbers<[1], [0], [0], [1], [0, 0, 1, 1], [], []>} : vector<8x128xf32>, vector<128x8xf32>, vector<8x8xf32> -> vector<8x8xf32>
    %c0_3 = arith.constant 0 : index
    %c0_4 = arith.constant 0 : index
    %3 = vector.load %arg2[%c0_3, %c0_4] : memref<8x1xf32, #tpu.memory_space<vmem>>, vector<8x1xf32>
    %c0_5 = arith.constant 0 : index
    %c0_6 = arith.constant 0 : index
    %4 = vector.load %arg3[%c0_5, %c0_6] : memref<1x8xf32, #tpu.memory_space<vmem>>, vector<1x8xf32>
    %5 = vector.broadcast %3 : vector<8x1xf32> to vector<8x8xf32>
    %6 = vector.broadcast %4 : vector<1x8xf32> to vector<8x8xf32>
    %7 = arith.addf %5, %6 : vector<8x8xf32>
    %cst_7 = arith.constant 2.000000e+00 : f32
    %8 = vector.broadcast %cst_7 : f32 to vector<8x8xf32>
    %9 = arith.mulf %8, %2 : vector<8x8xf32>
    %10 = arith.subf %7, %9 : vector<8x8xf32>
    %c0_8 = arith.constant 0 : index
    %c0_9 = arith.constant 0 : index
    %11 = vector.load %arg4[%c0_8, %c0_9] : memref<8x1xi32, #tpu.memory_space<vmem>>, vector<8x1xi32>
    %c0_10 = arith.constant 0 : index
    %c0_11 = arith.constant 0 : index
    %12 = vector.load %arg5[%c0_10, %c0_11] : memref<1x8xi32, #tpu.memory_space<vmem>>, vector<1x8xi32>
    %13 = vector.broadcast %11 : vector<8x1xi32> to vector<8x8xi32>
    %14 = vector.broadcast %12 : vector<1x8xi32> to vector<8x8xi32>
    %15 = arith.cmpi eq, %13, %14 : vector<8x8xi32>
    %cst_12 = arith.constant 0.000000e+00 : f32
    %16 = vector.broadcast %cst_12 : f32 to vector<8x8xf32>
    %17 = arith.select %15, %10, %16 : vector<8x8xi1>, vector<8x8xf32>
    %cst_13 = arith.constant dense<0xFF800000> : vector<8xf32>
    %18 = vector.multi_reduction <maximumf>, %17, %cst_13 [1] : vector<8x8xf32> to vector<8xf32>
    %19 = vector.shape_cast %18 : vector<8xf32> to vector<8x1xf32>
    %cst_14 = arith.constant 0x7F800000 : f32
    %20 = vector.broadcast %cst_14 : f32 to vector<8x8xf32>
    %21 = arith.select %15, %20, %10 : vector<8x8xi1>, vector<8x8xf32>
    %cst_15 = arith.constant dense<0x7F800000> : vector<8xf32>
    %22 = vector.multi_reduction <minimumf>, %21, %cst_15 [1] : vector<8x8xf32> to vector<8xf32>
    %23 = vector.shape_cast %22 : vector<8xf32> to vector<8x1xf32>
    %cst_16 = arith.constant 9.99999996E-13 : f32
    %24 = vector.broadcast %cst_16 : f32 to vector<8x1xf32>
    %25 = arith.maximumf %19, %24 : vector<8x1xf32>
    %26 = math.sqrt %25 : vector<8x1xf32>
    %cst_17 = arith.constant 9.99999996E-13 : f32
    %27 = vector.broadcast %cst_17 : f32 to vector<8x1xf32>
    %28 = arith.maximumf %23, %27 : vector<8x1xf32>
    %29 = math.sqrt %28 : vector<8x1xf32>
    %cst_18 = arith.constant -3.000000e-01 : f32
    %30 = vector.broadcast %cst_18 : f32 to vector<8x1xf32>
    %31 = arith.mulf %30, %26 : vector<8x1xf32>
    %32 = math.exp %31 : vector<8x1xf32>
    %33 = vector.shape_cast %32 : vector<8x1xf32> to vector<1x8x1xf32>
    %cst_19 = arith.constant dense<0.000000e+00> : vector<1xf32>
    %34 = vector.multi_reduction <add>, %33, %cst_19 [1, 2] : vector<1x8x1xf32> to vector<1xf32>
    %35 = vector.shape_cast %34 : vector<1xf32> to vector<1x1x1xf32>
    %36 = vector.extract %35[0, 0, 0] : f32 from vector<1x1x1xf32>
    %cst_20 = arith.constant 8.000000e+00 : f32
    %37 = arith.divf %36, %cst_20 : f32
    %cst_21 = arith.constant -3.000000e-01 : f32
    %38 = vector.broadcast %cst_21 : f32 to vector<8x1xf32>
    %39 = arith.mulf %38, %29 : vector<8x1xf32>
    %40 = math.exp %39 : vector<8x1xf32>
    %41 = vector.shape_cast %40 : vector<8x1xf32> to vector<1x8x1xf32>
    %cst_22 = arith.constant dense<0.000000e+00> : vector<1xf32>
    %42 = vector.multi_reduction <add>, %41, %cst_22 [1, 2] : vector<1x8x1xf32> to vector<1xf32>
    %43 = vector.shape_cast %42 : vector<1xf32> to vector<1x1x1xf32>
    %44 = vector.extract %43[0, 0, 0] : f32 from vector<1x1x1xf32>
    %cst_23 = arith.constant 8.000000e+00 : f32
    %45 = arith.divf %44, %cst_23 : f32
    %cst_24 = arith.constant 1.000000e+00 : f32
    %46 = arith.subf %cst_24, %37 : f32
    %47 = arith.addf %46, %45 : f32
    %c0_25 = arith.constant 0 : index
    %c0_26 = arith.constant 0 : index
    %48 = memref.load %arg6[%c0_25, %c0_26] : memref<1x1xf32, #tpu.memory_space<smem>>
    memref.store %47, %arg6[%c0_25, %c0_26] : memref<1x1xf32, #tpu.memory_space<smem>>
    return
  }
}

</mosaic_0001>

<llo_original>
// kernel: tpu_custom_call.1
$region0: #{tpu_custom_call.1}
  #allocation0 [shape = 'u32[]', space=smem, size = 0x4, offset = 0x4, fixed_abs, tag = 'smem constant byte address 0x4 - core index']
  #allocation1 [shape = 'u32[72,128]{1,0:T(1,128)}', space=vmem, size = 0x9000, scoped, tag = 'internal scratch']
  %s0 = inlined_call_operand.vmem [shape: f32[8,128], index: 0, kind: input, shape index: {}]
  %s1 = inlined_call_operand.vmem [shape: f32[128,8], index: 1, kind: input, shape index: {}]
  %s2 = inlined_call_operand.vmem [shape: f32[8,1], index: 2, kind: input, shape index: {}]
  %s3 = inlined_call_operand.vmem [shape: f32[1,8], index: 3, kind: input, shape index: {}]
  %s4 = inlined_call_operand.vmem [shape: s32[8,1], index: 4, kind: input, shape index: {}]
  %s5 = inlined_call_operand.vmem [shape: s32[1,8], index: 5, kind: input, shape index: {}]
  %s6 = inlined_call_operand.hbm [shape: f32[1,1], index: 6, kind: output, shape index: {}]
  %s7 = sld [smem:[#allocation0]]
  $region34: #{tpu_custom_call.1} parent=0
    _
  %s9 = ssub.s32 1, %s7
  %s10 = scalar_select 0, %s9, %s7
  $region1: #{tpu_custom_call.1} parent=0
    #allocation2 [shape = 'u8[512]{0}', space=smem, size = 0x200, scoped, tag = 'output window, operand 0, single buffered']
    #allocation3 [shape = 's32[1]{0}', space=sflag, size = 0x4, scoped, tag = 'scoped memory for tpu_custom_call.1']
    %11 = vsyncpa [#allocation3], 0
    // Predicated region
    $region2: #{tpu_custom_call.1} parent=1 // pred_check
      _
    $region3: #{tpu_custom_call.1} parent=1 // pred_check_branch
      %13 = sbr.rel (0) target = $region5
    $region4: #{tpu_custom_call.1} parent=1 // pred_region
      _
    $region5: #{tpu_custom_call.1} parent=1 // pred_fallthru
      _
    // Predicated region
    $region6: #{tpu_custom_call.1} parent=1 // pred_check
      _
    $region7: #{tpu_custom_call.1} parent=1 // pred_check_branch
      %15 = sbr.rel (0) target = $region9
    $region8: #{tpu_custom_call.1} parent=1 // pred_region
      _
    $region9: #{tpu_custom_call.1} parent=1 // pred_fallthru
      _
    // Predicated region
    $region10: #{tpu_custom_call.1} parent=1 // pred_check
      _
    $region11: #{tpu_custom_call.1} parent=1 // pred_check_branch
      %17 = sbr.rel (0) target = $region13
    $region12: #{tpu_custom_call.1} parent=1 // pred_region
      _
    $region13: #{tpu_custom_call.1} parent=1 // pred_fallthru
      _
    // Predicated region
    $region14: #{tpu_custom_call.1} parent=1 // pred_check
      _
    $region15: #{tpu_custom_call.1} parent=1 // pred_check_branch
      %19 = sbr.rel (0) target = $region17
    $region16: #{tpu_custom_call.1} parent=1 // pred_region
      _
    $region17: #{tpu_custom_call.1} parent=1 // pred_fallthru
      _
    // Predicated region
    $region18: #{tpu_custom_call.1} parent=1 // pred_check
      _
    $region19: #{tpu_custom_call.1} parent=1 // pred_check_branch
      %21 = sbr.rel (0) target = $region21
    $region20: #{tpu_custom_call.1} parent=1 // pred_region
      _
    $region21: #{tpu_custom_call.1} parent=1 // pred_fallthru
      _
    // Predicated region
    $region22: #{tpu_custom_call.1} parent=1 // pred_check
      _
    $region23: #{tpu_custom_call.1} parent=1 // pred_check_branch
      %23 = sbr.rel (0) target = $region25
    $region24: #{tpu_custom_call.1} parent=1 // pred_region
      _
    $region25: #{tpu_custom_call.1} parent=1 // pred_fallthru
      _
    %v24 = vld [vmem:[%s0] sm:$0xff]
    %v25 = vld [vmem:[%s1] sm:$0xff]
    %v26 = vld [vmem:[%s1 + $0x8] sm:$0xff]
    %v27 = vld [vmem:[%s1 + $0x10] sm:$0xff]
    %v28 = vld [vmem:[%s1 + $0x18] sm:$0xff]
    %v29 = vld [vmem:[%s1 + $0x20] sm:$0xff]
    %v30 = vld [vmem:[%s1 + $0x28] sm:$0xff]
    %v31 = vld [vmem:[%s1 + $0x30] sm:$0xff]
    %v32 = vld [vmem:[%s1 + $0x38] sm:$0xff]
    %v33 = vld [vmem:[%s1 + $0x40] sm:$0xff]
    %v34 = vld [vmem:[%s1 + $0x48] sm:$0xff]
    %v35 = vld [vmem:[%s1 + $0x50] sm:$0xff]
    %v36 = vld [vmem:[%s1 + $0x58] sm:$0xff]
    %v37 = vld [vmem:[%s1 + $0x60] sm:$0xff]
    %v38 = vld [vmem:[%s1 + $0x68] sm:$0xff]
    %v39 = vld [vmem:[%s1 + $0x70] sm:$0xff]
    %v40 = vld [vmem:[%s1 + $0x78] sm:$0xff]
    %41 = vmatpush.msra.mxu0 %v40
    %42 = vmatpush.msra.mxu0 %v39
    %43 = vmatpush.msra.mxu0 %v38
    %44 = vmatpush.msra.mxu0 %v37
    %45 = vmatpush.msra.mxu0 %v36
    %46 = vmatpush.msra.mxu0 %v35
    %47 = vmatpush.msra.mxu0 %v34
    %48 = vmatpush.msra.mxu0 %v33
    %49 = vmatpush.msra.mxu0 %v32
    %50 = vmatpush.msra.mxu0 %v31
    %51 = vmatpush.msra.mxu0 %v30
    %52 = vmatpush.msra.mxu0 %v29
    %53 = vmatpush.msra.mxu0 %v28
    %54 = vmatpush.msra.mxu0 %v27
    %55 = vmatpush.msra.mxu0 %v26
    %56 = vmatpush.msra.mxu0 %v25
    %57 = vmatmul.f32.gmra.mxu0 %v24
    %v58 = vpop.f32.mrf.mxu0
    %v59 = vadd.f32 0.0, %v58
    %60 = vdwg.mxu0
    %v61 = vld [vmem:[%s2] sm:$0xff]
    %v62 = vld [vmem:[%s3] sm:$0x1]
    %64 = vset.pattern.permute.xlu0 0
    %65 = vperm.xlu0 %64, %v61
    %v66 = vpop.permute.xlu0 %65
    %v69 = vperm.slane %v62, 0
    %v71 = vadd.f32 %v66, %v69
    %v72 = vmul.f32 %v59, 2.0
    %v73 = vsub.f32 %v71, %v72
    %v74 = vld [vmem:[%s4] sm:$0xff]
    %v75 = vld [vmem:[%s5] sm:$0x1]
    %76 = vset.pattern.permute.xlu0 0
    %77 = vperm.xlu0 %76, %v74
    %v78 = vpop.permute.xlu0 %77
    %v79 = vperm.slane %v75, 0
    %vm80 = vcmp.eq.s32.totalorder %v78, %v79
    %v81 = vsel %vm80, %v73, 0.0
    %vm82 = vcmask 64512
    %v83 = vsel %vm82, %v81, -inf
    %84 = vmax.xlane.f32.xlu0 %v83
    %v85 = vpop.xlane.xlu0 %84
    %v86 = vsel %vm80, inf, %v73
    %v87 = vsel %vm82, %v86, inf
    %88 = vmin.xlane.f32.xlu0 %v87
    %v89 = vpop.xlane.xlu0 %88
    %v90 = vmax.f32 %v85, 1e-12
    %v91 = vrsqrt.pop %v90
    %v92 = vmul.f32 %v91, %v90
    %v93 = vmul.f32 %v92, %v91
    %v94 = vmul.f32 0.5, %v93
    %v95 = vsub.f32 1.5, %v94
    %v96 = vmul.f32 %v91, %v95
    %v97 = vmul.f32 %v90, %v96
    %vm98 = vcmp.eq.f32.partialorder %v90, inf
    %v99 = vsel %vm98, %v90, %v97
    %vm100 = vcmp.eq.f32.partialorder %v90, 0.0
    %v101 = vand.u32 %v90, 2147483648
    %v102 = vsel %vm100, %v101, %v99
    %v103 = vmax.f32 %v89, 1e-12
    %v104 = vrsqrt.pop %v103
    %v105 = vmul.f32 %v104, %v103
    %v106 = vmul.f32 %v105, %v104
    %v107 = vmul.f32 0.5, %v106
    %v108 = vsub.f32 1.5, %v107
    %v109 = vmul.f32 %v104, %v108
    %v110 = vmul.f32 %v103, %v109
    %vm111 = vcmp.eq.f32.partialorder %v103, inf
    %v112 = vsel %vm111, %v103, %v110
    %vm113 = vcmp.eq.f32.partialorder %v103, 0.0
    %v114 = vand.u32 %v103, 2147483648
    %v115 = vsel %vm113, %v114, %v112
    %v116 = vmul.f32 %v102, -0.3
    %v117 = vmul.f32 %v116, 1.442695
    %v118 = vpow.pop %v117
    %vm119 = vcmask 7168
    %v120 = vsel %vm119, %v118, 0.0
    %121 = vadd.xlane.f32.xlu0 %v120
    %v122 = vpop.xlane.xlu0 %121
    %v123 = vrot.slane %v122, 4
    %v124 = vadd.f32 %v122, %v123
    %v125 = vrot.slane %v124, 2
    %v126 = vadd.f32 %v124, %v125
    %v127 = vrot.slane %v126, 1
    %v128 = vadd.f32 %v126, %v127
    %s129 = vtos %v128
    %v130 = vrcp.pop 8.0
    %v131 = vmul.f32 8.0, %v130
    %v132 = vsub.f32 1.0, %v131
    %v133 = vmul.f32 %v130, %v132
    %v134 = vadd.f32 %v130, %v133
    %vm135 = vweird.f32 %v130
    %v136 = vsel %vm135, %v130, %v134
    %s137 = vtos %v136
    %s138 = smul.f32 %s129, %s137
    %v139 = vmul.f32 %v115, -0.3
    %v140 = vmul.f32 %v139, 1.442695
    %v141 = vpow.pop %v140
    %v142 = vsel %vm119, %v141, 0.0
    %143 = vadd.xlane.f32.xlu0 %v142
    %v144 = vpop.xlane.xlu0 %143
    %v145 = vrot.slane %v144, 4
    %v146 = vadd.f32 %v144, %v145
    %v147 = vrot.slane %v146, 2
    %v148 = vadd.f32 %v146, %v147
    %v149 = vrot.slane %v148, 1
    %v150 = vadd.f32 %v148, %v149
    %s151 = vtos %v150
    %v152 = vrcp.pop 8.0
    %v153 = vmul.f32 8.0, %v152
    %v154 = vsub.f32 1.0, %v153
    %v155 = vmul.f32 %v152, %v154
    %v156 = vadd.f32 %v152, %v155
    %vm157 = vweird.f32 %v152
    %v158 = vsel %vm157, %v152, %v156
    %s159 = vtos %v158
    %s160 = smul.f32 %s151, %s159
    %s161 = ssub.f32 1.0, %s138
    %s162 = sadd.f32 %s161, %s160
    %s163 = scalar_lea.smem [#allocation2], 0
    %164 = sst [smem:[%s163]] %s162
    // Predicated region
    $region26: #{tpu_custom_call.1} parent=1 // pred_check
      _
    $region27: #{tpu_custom_call.1} parent=1 // pred_check_branch
      %166 = sbr.rel (0) target = $region29
    $region28: #{tpu_custom_call.1} parent=1 // pred_region
      %168 = vsyncadd [#allocation3], 0
      %s170 = sshll.u32 %s6, 4
      %s171 = int_to_ptr.hbm [resolvable:$true] %s170
      %173 = dma.smem_to_hbm [#allocation2], 16, %s171, [#allocation3]
    $region29: #{tpu_custom_call.1} parent=1 // pred_fallthru
      _
    // Predicated region
    $region30: #{tpu_custom_call.1} parent=1 // pred_check
      _
    $region31: #{tpu_custom_call.1} parent=1 // pred_check_branch
      %175 = sbr.rel (0) target = $region33
    $region32: #{tpu_custom_call.1} parent=1 // pred_region
      %177 = dma.done [#allocation3], 16
    $region33: #{tpu_custom_call.1} parent=1 // pred_fallthru
      _
    %178 = sfence
    %179 = vsyncpa [#allocation3], 1

</llo_original>
